<compile_context>
chip_gen: v6e
topology: v6e:2x2x1
jax: 0.10.0
libtpu: 0.0.40
codegen_flags: <defaults>
</compile_context>

<pallas_src>
import functools

import jax
import jax.numpy as jnp
from jax.experimental import pallas as pl
from jax.experimental.pallas import tpu as pltpu


def _yolo_loss_kernel(x_ref, lab_ref, out_ref, *, lambda_coord, lambda_noobj,
                      batch, tile_b):
    # x_ref  : (tile_b, 30, S)  channels on sublanes, spatial cells on lanes
    # lab_ref: (tile_b, 6,  S)
    # out_ref: (1, 1, S)        per-tile per-cell partial sums (lane-dense)
    x = x_ref[...].astype(jnp.float32)
    lab = lab_ref[...].astype(jnp.float32)

    # ---- box selection on the RAW conf logits (sigmoid is monotone) ----
    c1_raw = x[:, 4:5, :]
    c2_raw = x[:, 9:10, :]
    a = (c2_raw > c1_raw).astype(jnp.float32)      # 1.0 -> box2, ties -> box1
    na = 1.0 - a

    # Select raw channels first, then apply sigmoid / sqrt once (halves EUP work).
    final_coords = jax.nn.sigmoid(na * x[:, 0:2, :] + a * x[:, 5:7, :])
    final_dims = jnp.sqrt(
        jax.nn.sigmoid(na * x[:, 2:4, :] + a * x[:, 7:9, :]) + 1e-6)
    conf1 = jax.nn.sigmoid(c1_raw)
    conf2 = jax.nn.sigmoid(c2_raw)
    final_conf = na * conf1 + a * conf2
    rejected = na * conf2 + a * conf1

    # ---- softmax over the 20 class channels (sublane axis) ----
    logits = x[:, 10:30, :]
    m = jnp.max(logits, axis=1, keepdims=True)
    e = jnp.exp(logits - m)
    cls_pred = e / jnp.sum(e, axis=1, keepdims=True)

    # ---- labels ----
    label_coords = lab[:, 0:2, :]
    label_dims = jnp.sqrt(lab[:, 2:4, :] + 1e-6)
    obj = lab[:, 4:5, :]
    cls_id = lab[:, 5:6, :].astype(jnp.int32)

    # one-hot "scatter": onehot[b, c, s] = obj[b, s] where c == class id
    cls_iota = jax.lax.broadcasted_iota(jnp.int32, cls_pred.shape, 1)
    onehot = jnp.where(cls_iota == cls_id, obj, 0.0)

    # ---- per-cell weighted squared errors, fused into one (tb, 1, S) map ----
    class_t = jnp.sum((obj * cls_pred - onehot) ** 2, axis=1, keepdims=True)
    coord_t = jnp.sum((obj * final_coords - label_coords) ** 2, axis=1,
                      keepdims=True)
    dims_t = jnp.sum((obj * final_dims - label_dims) ** 2, axis=1,
                     keepdims=True)
    obj_t = (obj * final_conf - obj) ** 2
    noobj_t = ((1.0 - obj) * final_conf) ** 2 + rejected ** 2

    cell = (class_t
            + lambda_coord * (coord_t + dims_t)
            + obj_t
            + lambda_noobj * noobj_t)                      # (tile_b, 1, S)

    # Mask padded batch rows of the last grid tile (OOB block data is garbage).
    if batch % tile_b != 0:
        row = jax.lax.broadcasted_iota(jnp.int32, cell.shape, 0)
        valid = (pl.program_id(0) * tile_b + row) < batch
        cell = jnp.where(valid, cell, 0.0)

    # Single in-kernel reduction (over the batch tile); final reduce is in JAX.
    out_ref[...] = jnp.sum(cell, axis=0, keepdims=True)


def yolov1_loss(x_nchw, labels_nchw, lambda_coord=5.0, lambda_noobj=0.5):
    """x_nchw: (B, 30, H, W) float; labels_nchw: (B, 6, H, W) float."""
    B, Cx, H, W = x_nchw.shape
    Cl = labels_nchw.shape[1]
    S = H * W

    # Free reshapes only — no NCHW->NHWC transpose (saves a full HBM pass).
    x_k = x_nchw.reshape(B, Cx, S)
    lab_k = labels_nchw.reshape(B, Cl, S)

    tile_b = min(B, 128)                  # keeps per-tile VMEM small (v7x-safe)
    num_tiles = (B + tile_b - 1) // tile_b

    kern = functools.partial(
        _yolo_loss_kernel,
        lambda_coord=float(lambda_coord),
        lambda_noobj=float(lambda_noobj),
        batch=B,
        tile_b=tile_b,
    )

    partials = pl.pallas_call(
        kern,
        out_shape=jax.ShapeDtypeStruct((num_tiles, 1, S), jnp.float32),
        grid=(num_tiles,),
        in_specs=[
            pl.BlockSpec((tile_b, Cx, S), lambda i: (i, 0, 0)),
            pl.BlockSpec((tile_b, Cl, S), lambda i: (i, 0, 0)),
        ],
        out_specs=pl.BlockSpec((1, 1, S), lambda i: (i, 0, 0)),
        compiler_params=pltpu.CompilerParams(
            dimension_semantics=("parallel",)),
    )(x_k, lab_k)

    # Tiny final reduction in plain JAX; mean over batch == total sum / B.
    return jnp.sum(partials) / B


if __name__ == "__main__":
    B, H, W = 2, 7, 7  # YOLOv1 uses a 7x7 grid; x has 30 channels, labels 6
    key = jax.random.PRNGKey(0)
    k1, k2, k3, k4, k5 = jax.random.split(key, 5)

    x = jax.random.normal(k1, (B, 30, H, W), dtype=jnp.float32)
    coords = jax.random.uniform(k2, (B, 2, H, W), dtype=jnp.float32)
    dims = jax.random.uniform(k3, (B, 2, H, W), dtype=jnp.float32)
    obj = (jax.random.uniform(k4, (B, 1, H, W)) > 0.7).astype(jnp.float32)
    cls = jax.random.randint(k5, (B, 1, H, W), 0, 20).astype(jnp.float32)
    labels = jnp.concatenate([coords, dims, obj, cls], axis=1)

    loss = yolov1_loss(x, labels, lambda_coord=5.0, lambda_noobj=0.5)
    jax.block_until_ready(loss)
    print("KERNEL_OK")
</pallas_src>

<mosaic_0001>
module attributes {stable_mosaic.version = 11 : i64} {
  func.func @_yolo_loss_kernel(%arg0: i32, %arg1: memref<2x30x49xf32, #tpu.memory_space<vmem>>, %arg2: memref<2x6x49xf32, #tpu.memory_space<vmem>>, %arg3: memref<1x1x49xf32, #tpu.memory_space<vmem>>) attributes {dimension_semantics = [#tpu.dimension_semantics<parallel>], iteration_bounds = array<i64: 1>, scalar_prefetch = 0 : i64, scratch_operands = 0 : i64, tpu.core_type = #tpu.core_type<tc>, window_params = [{transform_indices = @transform_0, window_bounds = array<i64: 2, 30, 49>}, {transform_indices = @transform_1, window_bounds = array<i64: 2, 6, 49>}, {transform_indices = @transform_2, window_bounds = array<i64: 1, 1, 49>}]} {
    %c0 = arith.constant 0 : index
    %c0_0 = arith.constant 0 : index
    %c0_1 = arith.constant 0 : index
    %0 = vector.load %arg1[%c0, %c0_0, %c0_1] : memref<2x30x49xf32, #tpu.memory_space<vmem>>, vector<2x30x49xf32>
    %c0_2 = arith.constant 0 : index
    %c0_3 = arith.constant 0 : index
    %c0_4 = arith.constant 0 : index
    %1 = vector.load %arg2[%c0_2, %c0_3, %c0_4] : memref<2x6x49xf32, #tpu.memory_space<vmem>>, vector<2x6x49xf32>
    %2 = vector.extract_strided_slice %0 {offsets = [0, 4, 0], sizes = [2, 1, 49], strides = [1, 1, 1]} : vector<2x30x49xf32> to vector<2x1x49xf32>
    %3 = vector.extract_strided_slice %0 {offsets = [0, 9, 0], sizes = [2, 1, 49], strides = [1, 1, 1]} : vector<2x30x49xf32> to vector<2x1x49xf32>
    %4 = arith.cmpf ogt, %3, %2 : vector<2x1x49xf32>
    %5 = arith.extui %4 : vector<2x1x49xi1> to vector<2x1x49xi32>
    %6 = arith.sitofp %5 : vector<2x1x49xi32> to vector<2x1x49xf32>
    %cst = arith.constant 1.000000e+00 : f32
    %7 = vector.broadcast %cst : f32 to vector<2x1x49xf32>
    %8 = arith.subf %7, %6 : vector<2x1x49xf32>
    %9 = vector.extract_strided_slice %0 {offsets = [0, 0, 0], sizes = [2, 2, 49], strides = [1, 1, 1]} : vector<2x30x49xf32> to vector<2x2x49xf32>
    %10 = vector.broadcast %8 : vector<2x1x49xf32> to vector<2x2x49xf32>
    %11 = arith.mulf %10, %9 : vector<2x2x49xf32>
    %12 = vector.extract_strided_slice %0 {offsets = [0, 5, 0], sizes = [2, 2, 49], strides = [1, 1, 1]} : vector<2x30x49xf32> to vector<2x2x49xf32>
    %13 = vector.broadcast %6 : vector<2x1x49xf32> to vector<2x2x49xf32>
    %14 = arith.mulf %13, %12 : vector<2x2x49xf32>
    %15 = arith.addf %11, %14 : vector<2x2x49xf32>
    %16 = arith.negf %15 : vector<2x2x49xf32>
    %17 = math.exp %16 : vector<2x2x49xf32>
    %cst_5 = arith.constant 1.000000e+00 : f32
    %18 = vector.broadcast %cst_5 : f32 to vector<2x2x49xf32>
    %19 = arith.addf %18, %17 : vector<2x2x49xf32>
    %20 = arith.divf %18, %19 : vector<2x2x49xf32>
    %21 = vector.extract_strided_slice %0 {offsets = [0, 2, 0], sizes = [2, 2, 49], strides = [1, 1, 1]} : vector<2x30x49xf32> to vector<2x2x49xf32>
    %22 = vector.broadcast %8 : vector<2x1x49xf32> to vector<2x2x49xf32>
    %23 = arith.mulf %22, %21 : vector<2x2x49xf32>
    %24 = vector.extract_strided_slice %0 {offsets = [0, 7, 0], sizes = [2, 2, 49], strides = [1, 1, 1]} : vector<2x30x49xf32> to vector<2x2x49xf32>
    %25 = vector.broadcast %6 : vector<2x1x49xf32> to vector<2x2x49xf32>
    %26 = arith.mulf %25, %24 : vector<2x2x49xf32>
    %27 = arith.addf %23, %26 : vector<2x2x49xf32>
    %28 = arith.negf %27 : vector<2x2x49xf32>
    %29 = math.exp %28 : vector<2x2x49xf32>
    %cst_6 = arith.constant 1.000000e+00 : f32
    %30 = vector.broadcast %cst_6 : f32 to vector<2x2x49xf32>
    %31 = arith.addf %30, %29 : vector<2x2x49xf32>
    %32 = arith.divf %30, %31 : vector<2x2x49xf32>
    %cst_7 = arith.constant 9.99999997E-7 : f32
    %33 = vector.broadcast %cst_7 : f32 to vector<2x2x49xf32>
    %34 = arith.addf %32, %33 : vector<2x2x49xf32>
    %35 = math.sqrt %34 : vector<2x2x49xf32>
    %36 = arith.negf %2 : vector<2x1x49xf32>
    %37 = math.exp %36 : vector<2x1x49xf32>
    %cst_8 = arith.constant 1.000000e+00 : f32
    %38 = vector.broadcast %cst_8 : f32 to vector<2x1x49xf32>
    %39 = arith.addf %38, %37 : vector<2x1x49xf32>
    %40 = arith.divf %38, %39 : vector<2x1x49xf32>
    %41 = arith.negf %3 : vector<2x1x49xf32>
    %42 = math.exp %41 : vector<2x1x49xf32>
    %cst_9 = arith.constant 1.000000e+00 : f32
    %43 = vector.broadcast %cst_9 : f32 to vector<2x1x49xf32>
    %44 = arith.addf %43, %42 : vector<2x1x49xf32>
    %45 = arith.divf %43, %44 : vector<2x1x49xf32>
    %46 = arith.mulf %8, %40 : vector<2x1x49xf32>
    %47 = arith.mulf %6, %45 : vector<2x1x49xf32>
    %48 = arith.addf %46, %47 : vector<2x1x49xf32>
    %49 = arith.mulf %8, %45 : vector<2x1x49xf32>
    %50 = arith.mulf %6, %40 : vector<2x1x49xf32>
    %51 = arith.addf %49, %50 : vector<2x1x49xf32>
    %52 = vector.extract_strided_slice %0 {offsets = [0, 10, 0], sizes = [2, 20, 49], strides = [1, 1, 1]} : vector<2x30x49xf32> to vector<2x20x49xf32>
    %cst_10 = arith.constant dense<0xFF800000> : vector<2x49xf32>
    %53 = vector.multi_reduction <maximumf>, %52, %cst_10 [1] : vector<2x20x49xf32> to vector<2x49xf32>
    %54 = vector.shape_cast %53 : vector<2x49xf32> to vector<2x1x49xf32>
    %55 = vector.broadcast %54 : vector<2x1x49xf32> to vector<2x20x49xf32>
    %56 = arith.subf %52, %55 : vector<2x20x49xf32>
    %57 = math.exp %56 : vector<2x20x49xf32>
    %cst_11 = arith.constant dense<0.000000e+00> : vector<2x49xf32>
    %58 = vector.multi_reduction <add>, %57, %cst_11 [1] : vector<2x20x49xf32> to vector<2x49xf32>
    %59 = vector.shape_cast %58 : vector<2x49xf32> to vector<2x1x49xf32>
    %60 = vector.broadcast %59 : vector<2x1x49xf32> to vector<2x20x49xf32>
    %61 = arith.divf %57, %60 : vector<2x20x49xf32>
    %62 = vector.extract_strided_slice %1 {offsets = [0, 0, 0], sizes = [2, 2, 49], strides = [1, 1, 1]} : vector<2x6x49xf32> to vector<2x2x49xf32>
    %63 = vector.extract_strided_slice %1 {offsets = [0, 2, 0], sizes = [2, 2, 49], strides = [1, 1, 1]} : vector<2x6x49xf32> to vector<2x2x49xf32>
    %cst_12 = arith.constant 9.99999997E-7 : f32
    %64 = vector.broadcast %cst_12 : f32 to vector<2x2x49xf32>
    %65 = arith.addf %63, %64 : vector<2x2x49xf32>
    %66 = math.sqrt %65 : vector<2x2x49xf32>
    %67 = vector.extract_strided_slice %1 {offsets = [0, 4, 0], sizes = [2, 1, 49], strides = [1, 1, 1]} : vector<2x6x49xf32> to vector<2x1x49xf32>
    %68 = vector.extract_strided_slice %1 {offsets = [0, 5, 0], sizes = [2, 1, 49], strides = [1, 1, 1]} : vector<2x6x49xf32> to vector<2x1x49xf32>
    %69 = arith.fptosi %68 : vector<2x1x49xf32> to vector<2x1x49xi32>
    %70 = tpu.iota {dimensions = array<i32: 1>} : vector<2x20x49xi32>
    %71 = vector.broadcast %69 : vector<2x1x49xi32> to vector<2x20x49xi32>
    %72 = arith.cmpi eq, %70, %71 : vector<2x20x49xi32>
    %cst_13 = arith.constant 0.000000e+00 : f32
    %73 = vector.shape_cast %67 : vector<2x1x49xf32> to vector<2x1x49xf32>
    %74 = vector.broadcast %73 : vector<2x1x49xf32> to vector<2x20x49xf32>
    %75 = vector.broadcast %cst_13 : f32 to vector<2x20x49xf32>
    %76 = arith.select %72, %74, %75 : vector<2x20x49xi1>, vector<2x20x49xf32>
    %77 = vector.broadcast %67 : vector<2x1x49xf32> to vector<2x20x49xf32>
    %78 = arith.mulf %77, %61 : vector<2x20x49xf32>
    %79 = arith.subf %78, %76 : vector<2x20x49xf32>
    %80 = arith.mulf %79, %79 : vector<2x20x49xf32>
    %cst_14 = arith.constant dense<0.000000e+00> : vector<2x49xf32>
    %81 = vector.multi_reduction <add>, %80, %cst_14 [1] : vector<2x20x49xf32> to vector<2x49xf32>
    %82 = vector.shape_cast %81 : vector<2x49xf32> to vector<2x1x49xf32>
    %83 = vector.broadcast %67 : vector<2x1x49xf32> to vector<2x2x49xf32>
    %84 = arith.mulf %83, %20 : vector<2x2x49xf32>
    %85 = arith.subf %84, %62 : vector<2x2x49xf32>
    %86 = arith.mulf %85, %85 : vector<2x2x49xf32>
    %cst_15 = arith.constant dense<0.000000e+00> : vector<2x49xf32>
    %87 = vector.multi_reduction <add>, %86, %cst_15 [1] : vector<2x2x49xf32> to vector<2x49xf32>
    %88 = vector.shape_cast %87 : vector<2x49xf32> to vector<2x1x49xf32>
    %89 = vector.broadcast %67 : vector<2x1x49xf32> to vector<2x2x49xf32>
    %90 = arith.mulf %89, %35 : vector<2x2x49xf32>
    %91 = arith.subf %90, %66 : vector<2x2x49xf32>
    %92 = arith.mulf %91, %91 : vector<2x2x49xf32>
    %cst_16 = arith.constant dense<0.000000e+00> : vector<2x49xf32>
    %93 = vector.multi_reduction <add>, %92, %cst_16 [1] : vector<2x2x49xf32> to vector<2x49xf32>
    %94 = vector.shape_cast %93 : vector<2x49xf32> to vector<2x1x49xf32>
    %95 = arith.mulf %67, %48 : vector<2x1x49xf32>
    %96 = arith.subf %95, %67 : vector<2x1x49xf32>
    %97 = arith.mulf %96, %96 : vector<2x1x49xf32>
    %cst_17 = arith.constant 1.000000e+00 : f32
    %98 = vector.broadcast %cst_17 : f32 to vector<2x1x49xf32>
    %99 = arith.subf %98, %67 : vector<2x1x49xf32>
    %100 = arith.mulf %99, %48 : vector<2x1x49xf32>
    %101 = arith.mulf %100, %100 : vector<2x1x49xf32>
    %102 = arith.mulf %51, %51 : vector<2x1x49xf32>
    %103 = arith.addf %101, %102 : vector<2x1x49xf32>
    %104 = arith.addf %88, %94 : vector<2x1x49xf32>
    %cst_18 = arith.constant 5.000000e+00 : f32
    %105 = vector.broadcast %cst_18 : f32 to vector<2x1x49xf32>
    %106 = arith.mulf %105, %104 : vector<2x1x49xf32>
    %107 = arith.addf %82, %106 : vector<2x1x49xf32>
    %108 = arith.addf %107, %97 : vector<2x1x49xf32>
    %cst_19 = arith.constant 5.000000e-01 : f32
    %109 = vector.broadcast %cst_19 : f32 to vector<2x1x49xf32>
    %110 = arith.mulf %109, %103 : vector<2x1x49xf32>
    %111 = arith.addf %108, %110 : vector<2x1x49xf32>
    %cst_20 = arith.constant dense<0.000000e+00> : vector<1x49xf32>
    %112 = vector.multi_reduction <add>, %111, %cst_20 [0] : vector<2x1x49xf32> to vector<1x49xf32>
    %113 = vector.shape_cast %112 : vector<1x49xf32> to vector<1x1x49xf32>
    %c0_21 = arith.constant 0 : index
    %c0_22 = arith.constant 0 : index
    %c0_23 = arith.constant 0 : index
    %114 = vector.load %arg3[%c0_21, %c0_22, %c0_23] : memref<1x1x49xf32, #tpu.memory_space<vmem>>, vector<1x1x49xf32>
    tpu.vector_store %arg3[%c0_21, %c0_22, %c0_23], %113 {strides = array<i32>} : memref<1x1x49xf32, #tpu.memory_space<vmem>>, vector<1x1x49xf32>,
    return
  }
  func.func @transform_0(%arg0: i32) -> (i32, i32, i32) {
    %c0_i32 = arith.constant 0 : i32
    %c0_i32_0 = arith.constant 0 : i32
    %c0_i32_1 = arith.constant 0 : i32
    return %arg0, %c0_i32, %c0_i32_0 : i32, i32, i32
  }
  func.func @transform_1(%arg0: i32) -> (i32, i32, i32) {
    %c0_i32 = arith.constant 0 : i32
    %c0_i32_0 = arith.constant 0 : i32
    %c0_i32_1 = arith.constant 0 : i32
    return %arg0, %c0_i32, %c0_i32_0 : i32, i32, i32
  }
  func.func @transform_2(%arg0: i32) -> (i32, i32, i32) {
    %c0_i32 = arith.constant 0 : i32
    %c0_i32_0 = arith.constant 0 : i32
    %c0_i32_1 = arith.constant 0 : i32
    return %arg0, %c0_i32, %c0_i32_0 : i32, i32, i32
  }
}

</mosaic_0001>

<llo_original>
// kernel: tpu_custom_call.1
$region0: #{tpu_custom_call.1}
  #allocation0 [shape = 'u32[]', space=smem, size = 0x4, offset = 0x4, fixed_abs, tag = 'smem constant byte address 0x4 - core index']
  #allocation1 [shape = 'u32[144,128]{1,0:T(1,128)}', space=vmem, size = 0x12000, scoped, tag = 'internal scratch']
  %s0 = inlined_call_operand.vmem [shape: f32[2,30,49], index: 0, kind: input, shape index: {}]
  %s1 = inlined_call_operand.vmem [shape: f32[2,6,49], index: 1, kind: input, shape index: {}]
  %s2 = inlined_call_operand.hbm [shape: f32[1,1,49], index: 2, kind: output, shape index: {}]
  %s3 = sld [smem:[#allocation0]]
  $region18: #{tpu_custom_call.1} parent=0
    _
  %s5 = ssub.s32 1, %s3
  %s6 = scalar_select 0, %s5, %s3
  $region1: #{tpu_custom_call.1} parent=0
    #allocation2 [shape = 'u8[512]{0}', space=vmem, size = 0x400, scoped, tag = 'output window, operand 0, single buffered']
    #allocation3 [shape = 's32[1]{0}', space=sflag, size = 0x4, scoped, tag = 'scoped memory for tpu_custom_call.1']
    %7 = vsyncpa [#allocation3], 0
    // Predicated region
    $region2: #{tpu_custom_call.1} parent=1 // pred_check
      _
    $region3: #{tpu_custom_call.1} parent=1 // pred_check_branch
      %9 = sbr.rel (0) target = $region5
    $region4: #{tpu_custom_call.1} parent=1 // pred_region
      _
    $region5: #{tpu_custom_call.1} parent=1 // pred_fallthru
      _
    // Predicated region
    $region6: #{tpu_custom_call.1} parent=1 // pred_check
      _
    $region7: #{tpu_custom_call.1} parent=1 // pred_check_branch
      %11 = sbr.rel (0) target = $region9
    $region8: #{tpu_custom_call.1} parent=1 // pred_region
      _
    $region9: #{tpu_custom_call.1} parent=1 // pred_fallthru
      _
    %v12 = vld [vmem:[%s0] sm:$0xff]
    %v13 = vld [vmem:[%s0 + $0x8] sm:$0xff]
    %v14 = vld [vmem:[%s0 + $0x10] sm:$0xff]
    %v15 = vld [vmem:[%s0 + $0x18] sm:$0x3f]
    %v16 = vld [vmem:[%s0 + $0x20] sm:$0xff]
    %v17 = vld [vmem:[%s0 + $0x28] sm:$0xff]
    %v18 = vld [vmem:[%s0 + $0x30] sm:$0xff]
    %v19 = vld [vmem:[%s0 + $0x38] sm:$0x3f]
    %v20 = vld [vmem:[%s1] sm:$0x3f]
    %v21 = vld [vmem:[%s1 + $0x8] sm:$0x3f]
    %v24 = vrot.slane %v12, 3
    %v25 = vrot.slane %v16, 3
    %vm28 = vcmp.gt.f32.partialorder %v13, %v24
    %vm29 = vcmp.gt.f32.partialorder %v17, %v25
    %v30 = vsel %vm28, 1, 0
    %v31 = vsel %vm29, 1, 0
    %v32 = vcvt.s32.f32 %v30
    %v33 = vcvt.s32.f32 %v31
    %v34 = vsub.f32 1.0, %v32
    %v35 = vsub.f32 1.0, %v33
    %v36 = vlaneseq
    %v37 = vshrl.u32 %v36, 7
    %v38 = vsub.s32 1, %v37
    %v39 = vrot.slane %v34, %v38
    %v40 = vlaneseq
    %v41 = vshrl.u32 %v40, 7
    %v42 = vsub.s32 1, %v41
    %v43 = vrot.slane %v35, %v42
    %v44 = vmul.f32 %v39, %v12
    %v45 = vmul.f32 %v43, %v16
    %v46 = vlaneseq
    %v47 = vshrl.u32 %v46, 7
    %v48 = vsub.s32 1, %v47
    %v49 = vrot.slane %v32, %v48
    %v50 = vlaneseq
    %v51 = vshrl.u32 %v50, 7
    %v52 = vsub.s32 1, %v51
    %v53 = vrot.slane %v33, %v52
    %v54 = vmul.f32 %v49, %v12
    %v55 = vmul.f32 %v53, %v16
    %v58 = vrot.slane %v54, 5
    %v59 = vrot.slane %v55, 5
    %v62 = vadd.f32 %v44, %v58
    %v63 = vadd.f32 %v45, %v59
    %v64 = vxor.u32 %v62, 2147483648
    %v65 = vxor.u32 %v63, 2147483648
    %v66 = vmul.f32 %v64, 1.442695
    %v67 = vpow.pop %v66
    %v68 = vmul.f32 %v65, 1.442695
    %v69 = vpow.pop %v68
    %v70 = vadd.f32 %v67, 1.0
    %v71 = vadd.f32 %v69, 1.0
    %v72 = vrcp.pop %v70
    %v73 = vmul.f32 1.0, %v72
    %v74 = vrcp.pop %v71
    %v75 = vmul.f32 1.0, %v74
    %v76 = vmul.f32 %v49, %v13
    %v77 = vmul.f32 %v53, %v17
    %vm80 = vcmask 1042432
    %v81 = vrot.slane %v76, 5
    %v82 = vsel %vm80, %v58, %v81
    %v83 = vrot.slane %v77, 5
    %v84 = vsel %vm80, %v59, %v83
    %v87 = vadd.f32 %v44, %v82
    %v88 = vadd.f32 %v45, %v84
    %v89 = vxor.u32 %v87, 2147483648
    %v90 = vxor.u32 %v88, 2147483648
    %v91 = vmul.f32 %v89, 1.442695
    %v92 = vpow.pop %v91
    %v93 = vmul.f32 %v90, 1.442695
    %v94 = vpow.pop %v93
    %v95 = vadd.f32 %v92, 1.0
    %v96 = vadd.f32 %v94, 1.0
    %v97 = vrcp.pop %v95
    %v98 = vmul.f32 1.0, %v97
    %v99 = vrcp.pop %v96
    %v100 = vmul.f32 1.0, %v99
    %v101 = vadd.f32 %v98, 1e-06
    %v102 = vadd.f32 %v100, 1e-06
    %v103 = vrsqrt.pop %v101
    %v104 = vmul.f32 %v101, %v103
    %vm105 = vcmp.eq.f32.partialorder %v101, inf
    %v106 = vsel %vm105, %v101, %v104
    %vm107 = vcmp.eq.f32.partialorder %v101, 0.0
    %v108 = vand.u32 %v101, 2147483648
    %v109 = vsel %vm107, %v108, %v106
    %v110 = vrsqrt.pop %v102
    %v111 = vmul.f32 %v102, %v110
    %vm112 = vcmp.eq.f32.partialorder %v102, inf
    %v113 = vsel %vm112, %v102, %v111
    %vm114 = vcmp.eq.f32.partialorder %v102, 0.0
    %v115 = vand.u32 %v102, 2147483648
    %v116 = vsel %vm114, %v115, %v113
    %v117 = vxor.u32 %v12, 2147483648
    %v118 = vxor.u32 %v16, 2147483648
    %v119 = vmul.f32 %v117, 1.442695
    %v120 = vpow.pop %v119
    %v121 = vmul.f32 %v118, 1.442695
    %v122 = vpow.pop %v121
    %v123 = vadd.f32 %v120, 1.0
    %v124 = vadd.f32 %v122, 1.0
    %v125 = vrcp.pop %v123
    %v126 = vmul.f32 1.0, %v125
    %v127 = vrcp.pop %v124
    %v128 = vmul.f32 1.0, %v127
    %v129 = vxor.u32 %v13, 2147483648
    %v130 = vxor.u32 %v17, 2147483648
    %v131 = vmul.f32 %v129, 1.442695
    %v132 = vpow.pop %v131
    %v133 = vmul.f32 %v130, 1.442695
    %v134 = vpow.pop %v133
    %v135 = vadd.f32 %v132, 1.0
    %v136 = vadd.f32 %v134, 1.0
    %v137 = vrcp.pop %v135
    %v138 = vmul.f32 1.0, %v137
    %v139 = vrcp.pop %v136
    %v140 = vmul.f32 1.0, %v139
    %v143 = vrot.slane %v126, 3
    %v144 = vrot.slane %v128, 3
    %v147 = vmul.f32 %v34, %v143
    %v148 = vmul.f32 %v35, %v144
    %v149 = vmul.f32 %v32, %v138
    %v150 = vmul.f32 %v33, %v140
    %v151 = vadd.f32 %v147, %v149
    %v152 = vadd.f32 %v148, %v150
    %v153 = vmul.f32 %v34, %v138
    %v154 = vmul.f32 %v35, %v140
    %v155 = vmul.f32 %v32, %v143
    %v156 = vmul.f32 %v33, %v144
    %v157 = vadd.f32 %v153, %v155
    %v158 = vadd.f32 %v154, %v156
    %vm159 = vcmask 400386
    %v160 = vsel %vm159, %v13, -inf
    %vm161 = vcmask 400384
    %v162 = vsel %vm161, %v14, -inf
    %vm163 = vcmask 398336
    %v164 = vsel %vm163, %v15, -inf
    %v165 = vmax.f32 %v160, %v164
    %v166 = vmax.f32 %v165, %v162
    %v167 = vrot.slane %v166, 4
    %v168 = vmax.f32 %v166, %v167
    %v169 = vrot.slane %v168, 2
    %v170 = vmax.f32 %v168, %v169
    %v171 = vrot.slane %v170, 1
    %v172 = vmax.f32 %v170, %v171
    %v173 = vsel %vm159, %v17, -inf
    %v174 = vsel %vm161, %v18, -inf
    %v175 = vsel %vm163, %v19, -inf
    %v176 = vmax.f32 %v173, %v175
    %v177 = vmax.f32 %v176, %v174
    %v178 = vrot.slane %v177, 4
    %v179 = vmax.f32 %v177, %v178
    %v180 = vrot.slane %v179, 2
    %v181 = vmax.f32 %v179, %v180
    %v182 = vrot.slane %v181, 1
    %v183 = vmax.f32 %v181, %v182
    %v184 = vsub.f32 %v13, %v172
    %v185 = vsub.f32 %v14, %v172
    %v186 = vsub.f32 %v15, %v172
    %v187 = vsub.f32 %v17, %v183
    %v188 = vsub.f32 %v18, %v183
    %v189 = vsub.f32 %v19, %v183
    %v190 = vmul.f32 %v184, 1.442695
    %v191 = vpow.pop %v190
    %v192 = vmul.f32 %v185, 1.442695
    %v193 = vpow.pop %v192
    %v194 = vmul.f32 %v186, 1.442695
    %v195 = vpow.pop %v194
    %v196 = vmul.f32 %v187, 1.442695
    %v197 = vpow.pop %v196
    %v198 = vmul.f32 %v188, 1.442695
    %v199 = vpow.pop %v198
    %v200 = vmul.f32 %v189, 1.442695
    %v201 = vpow.pop %v200
    %vm208 = vcmask 1045504
    %v209 = vrot.slane %v191, 2
    %v210 = vrot.slane %v193, 2
    %v211 = vsel %vm208, %v209, %v210
    %v212 = vrot.slane %v195, 2
    %v213 = vsel %vm208, %v210, %v212
    %v214 = vrot.slane %v197, 2
    %v215 = vrot.slane %v199, 2
    %v216 = vsel %vm208, %v214, %v215
    %v217 = vrot.slane %v201, 2
    %v218 = vsel %vm208, %v215, %v217
    %v225 = vsel %vm161, %v211, 0.0
    %v226 = vsel %vm161, %v213, 0.0
    %v227 = vadd.f32 %v225, %v226
    %vm228 = vcmask 396288
    %v229 = vsel %vm228, %v212, 0.0
    %v230 = vadd.f32 %v227, %v229
    %v231 = vrot.slane %v230, 4
    %v232 = vadd.f32 %v230, %v231
    %v233 = vrot.slane %v232, 2
    %v234 = vadd.f32 %v232, %v233
    %v235 = vrot.slane %v234, 1
    %v236 = vadd.f32 %v234, %v235
    %v237 = vsel %vm161, %v216, 0.0
    %v238 = vsel %vm161, %v218, 0.0
    %v239 = vadd.f32 %v237, %v238
    %v240 = vsel %vm228, %v217, 0.0
    %v241 = vadd.f32 %v239, %v240
    %v242 = vrot.slane %v241, 4
    %v243 = vadd.f32 %v241, %v242
    %v244 = vrot.slane %v243, 2
    %v245 = vadd.f32 %v243, %v244
    %v246 = vrot.slane %v245, 1
    %v247 = vadd.f32 %v245, %v246
    %v248 = vrcp.pop %v236
    %v249 = vmul.f32 %v191, %v248
    %v250 = vmul.f32 %v193, %v248
    %v251 = vmul.f32 %v195, %v248
    %v252 = vrcp.pop %v247
    %v253 = vmul.f32 %v197, %v252
    %v254 = vmul.f32 %v199, %v252
    %v255 = vmul.f32 %v201, %v252
    %v256 = vadd.f32 %v20, 1e-06
    %v257 = vadd.f32 %v21, 1e-06
    %v258 = vrsqrt.pop %v256
    %v259 = vmul.f32 %v256, %v258
    %vm260 = vcmp.eq.f32.partialorder %v256, inf
    %v261 = vsel %vm260, %v256, %v259
    %vm262 = vcmp.eq.f32.partialorder %v256, 0.0
    %v263 = vand.u32 %v256, 2147483648
    %v264 = vsel %vm262, %v263, %v261
    %v265 = vrsqrt.pop %v257
    %v266 = vmul.f32 %v257, %v265
    %vm267 = vcmp.eq.f32.partialorder %v257, inf
    %v268 = vsel %vm267, %v257, %v266
    %vm269 = vcmp.eq.f32.partialorder %v257, 0.0
    %v270 = vand.u32 %v257, 2147483648
    %v271 = vsel %vm269, %v270, %v268
    %v272 = vcvt.f32.s32.to.zero.pseudo %v20
    %v273 = vcvt.f32.s32.to.zero.pseudo %v21
    %v274 = vlaneseq
    %v275 = vshrl.u32 %v274, 7
    %v276 = vadd.s32 %v275, 8
    %v277 = vadd.s32 %v275, 16
    %v278 = vlaneseq
    %v279 = vshrl.u32 %v278, 7
    %v280 = vsub.s32 5, %v279
    %v281 = vrot.slane %v272, %v280
    %v282 = vlaneseq
    %v283 = vshrl.u32 %v282, 7
    %v284 = vsub.s32 5, %v283
    %v285 = vrot.slane %v273, %v284
    %vm286 = vcmp.eq.s32.totalorder %v275, %v281
    %vm287 = vcmp.eq.s32.totalorder %v276, %v281
    %vm288 = vcmp.eq.s32.totalorder %v277, %v281
    %vm289 = vcmp.eq.s32.totalorder %v275, %v285
    %vm290 = vcmp.eq.s32.totalorder %v276, %v285
    %vm291 = vcmp.eq.s32.totalorder %v277, %v285
    %v292 = vlaneseq
    %v293 = vshrl.u32 %v292, 7
    %v294 = vsub.s32 4, %v293
    %v295 = vrot.slane %v20, %v294
    %v296 = vlaneseq
    %v297 = vshrl.u32 %v296, 7
    %v298 = vsub.s32 4, %v297
    %v299 = vrot.slane %v21, %v298
    %v300 = vsel %vm286, %v295, 0.0
    %v301 = vsel %vm287, %v295, 0.0
    %v302 = vsel %vm288, %v295, 0.0
    %v303 = vsel %vm289, %v299, 0.0
    %v304 = vsel %vm290, %v299, 0.0
    %v305 = vsel %vm291, %v299, 0.0
    %v306 = vmul.f32 %v295, %v249
    %v307 = vmul.f32 %v295, %v250
    %v308 = vmul.f32 %v295, %v251
    %v309 = vmul.f32 %v299, %v253
    %v310 = vmul.f32 %v299, %v254
    %v311 = vmul.f32 %v299, %v255
    %vm318 = vcmask 1041408
    %v319 = vrot.slane %v300, 6
    %v320 = vrot.slane %v301, 6
    %v321 = vsel %vm318, %v319, %v320
    %v322 = vrot.slane %v302, 6
    %v323 = vsel %vm318, %v320, %v322
    %v324 = vrot.slane %v303, 6
    %v325 = vrot.slane %v304, 6
    %v326 = vsel %vm318, %v324, %v325
    %v327 = vrot.slane %v305, 6
    %v328 = vsel %vm318, %v325, %v327
    %v335 = vsub.f32 %v306, %v319
    %v336 = vsub.f32 %v307, %v321
    %v337 = vsub.f32 %v308, %v323
    %v338 = vsub.f32 %v309, %v324
    %v339 = vsub.f32 %v310, %v326
    %v340 = vsub.f32 %v311, %v328
    %v341 = vmul.f32 %v335, %v335
    %v342 = vmul.f32 %v336, %v336
    %v343 = vmul.f32 %v337, %v337
    %v344 = vmul.f32 %v338, %v338
    %v345 = vmul.f32 %v339, %v339
    %v346 = vmul.f32 %v340, %v340
    %v353 = vrot.slane %v341, 2
    %v354 = vrot.slane %v342, 2
    %v355 = vsel %vm208, %v353, %v354
    %v356 = vrot.slane %v343, 2
    %v357 = vsel %vm208, %v354, %v356
    %v358 = vrot.slane %v344, 2
    %v359 = vrot.slane %v345, 2
    %v360 = vsel %vm208, %v358, %v359
    %v361 = vrot.slane %v346, 2
    %v362 = vsel %vm208, %v359, %v361
    %v369 = vsel %vm161, %v355, 0.0
    %v370 = vsel %vm161, %v357, 0.0
    %v371 = vadd.f32 %v369, %v370
    %v372 = vsel %vm228, %v356, 0.0
    %v373 = vadd.f32 %v371, %v372
    %v374 = vrot.slane %v373, 4
    %v375 = vadd.f32 %v373, %v374
    %v376 = vrot.slane %v375, 2
    %v377 = vadd.f32 %v375, %v376
    %v378 = vrot.slane %v377, 1
    %v379 = vadd.f32 %v377, %v378
    %v380 = vsel %vm161, %v360, 0.0
    %v381 = vsel %vm161, %v362, 0.0
    %v382 = vadd.f32 %v380, %v381
    %v383 = vsel %vm228, %v361, 0.0
    %v384 = vadd.f32 %v382, %v383
    %v385 = vrot.slane %v384, 4
    %v386 = vadd.f32 %v384, %v385
    %v387 = vrot.slane %v386, 2
    %v388 = vadd.f32 %v386, %v387
    %v389 = vrot.slane %v388, 1
    %v390 = vadd.f32 %v388, %v389
    %v391 = vmul.f32 %v295, %v73
    %v392 = vmul.f32 %v299, %v75
    %v393 = vsub.f32 %v391, %v20
    %v394 = vsub.f32 %v392, %v21
    %v395 = vmul.f32 %v393, %v393
    %v396 = vmul.f32 %v394, %v394
    %vm397 = vcmask 394240
    %v398 = vsel %vm397, %v395, 0.0
    %v399 = vrot.slane %v398, 4
    %v400 = vadd.f32 %v398, %v399
    %v401 = vrot.slane %v400, 2
    %v402 = vadd.f32 %v400, %v401
    %v403 = vrot.slane %v402, 1
    %v404 = vadd.f32 %v402, %v403
    %v405 = vsel %vm397, %v396, 0.0
    %v406 = vrot.slane %v405, 4
    %v407 = vadd.f32 %v405, %v406
    %v408 = vrot.slane %v407, 2
    %v409 = vadd.f32 %v407, %v408
    %v410 = vrot.slane %v409, 1
    %v411 = vadd.f32 %v409, %v410
    %v412 = vmul.f32 %v295, %v109
    %v413 = vmul.f32 %v299, %v116
    %v414 = vsub.f32 %v412, %v264
    %v415 = vsub.f32 %v413, %v271
    %v416 = vmul.f32 %v414, %v414
    %v417 = vmul.f32 %v415, %v415
    %v420 = vrot.slane %v416, 2
    %v421 = vrot.slane %v417, 2
    %v424 = vsel %vm397, %v420, 0.0
    %v425 = vrot.slane %v424, 4
    %v426 = vadd.f32 %v424, %v425
    %v427 = vrot.slane %v426, 2
    %v428 = vadd.f32 %v426, %v427
    %v429 = vrot.slane %v428, 1
    %v430 = vadd.f32 %v428, %v429
    %v431 = vsel %vm397, %v421, 0.0
    %v432 = vrot.slane %v431, 4
    %v433 = vadd.f32 %v431, %v432
    %v434 = vrot.slane %v433, 2
    %v435 = vadd.f32 %v433, %v434
    %v436 = vrot.slane %v435, 1
    %v437 = vadd.f32 %v435, %v436
    %v440 = vrot.slane %v151, 5
    %v441 = vrot.slane %v152, 5
    %v444 = vmul.f32 %v20, %v440
    %v445 = vmul.f32 %v21, %v441
    %v446 = vsub.f32 %v444, %v20
    %v447 = vsub.f32 %v445, %v21
    %v448 = vmul.f32 %v446, %v446
    %v449 = vmul.f32 %v447, %v447
    %v450 = vsub.f32 1.0, %v20
    %v451 = vsub.f32 1.0, %v21
    %v452 = vmul.f32 %v450, %v440
    %v453 = vmul.f32 %v451, %v441
    %v454 = vmul.f32 %v452, %v452
    %v455 = vmul.f32 %v453, %v453
    %v456 = vmul.f32 %v157, %v157
    %v457 = vmul.f32 %v158, %v158
    %v460 = vrot.slane %v456, 5
    %v461 = vrot.slane %v457, 5
    %v464 = vadd.f32 %v454, %v460
    %v465 = vadd.f32 %v455, %v461
    %v466 = vadd.f32 %v404, %v430
    %v467 = vadd.f32 %v411, %v437
    %v468 = vmul.f32 %v466, 5.0
    %v469 = vmul.f32 %v467, 5.0
    %v470 = vadd.f32 %v379, %v468
    %v471 = vadd.f32 %v390, %v469
    %v472 = vadd.f32 %v470, %v448
    %v473 = vadd.f32 %v471, %v449
    %v474 = vmul.f32 %v464, 0.5
    %v475 = vmul.f32 %v465, 0.5
    %v476 = vadd.f32 %v472, %v474
    %v477 = vadd.f32 %v473, %v475
    %vm478 = vcmask 397316
    %v479 = vsel %vm478, %v476, 0.0
    %v480 = vsel %vm478, %v477, 0.0
    %v481 = vadd.f32 %v479, %v480
    %482 = vst.msk [vmem:[#allocation2 - $0x4] sm:$0x10] %vm478, %v481
    // Predicated region
    $region10: #{tpu_custom_call.1} parent=1 // pred_check
      _
    $region11: #{tpu_custom_call.1} parent=1 // pred_check_branch
      %484 = sbr.rel (0) target = $region13
    $region12: #{tpu_custom_call.1} parent=1 // pred_region
      %s486 = ssub.s32 16, 16
      %487 = vsyncadd [#allocation3], %s486
      %s489 = sshll.u32 [#allocation2], 4
      %s490 = int_to_ptr.vmem [resolvable:$true] %s489
      %492 = dma.vmem_to_hbm [thread:$0]  %s490, 16, %s2, [#allocation3]
    $region13: #{tpu_custom_call.1} parent=1 // pred_fallthru
      _
    // Predicated region
    $region14: #{tpu_custom_call.1} parent=1 // pred_check
      _
    $region15: #{tpu_custom_call.1} parent=1 // pred_check_branch
      %494 = sbr.rel (0) target = $region17
    $region16: #{tpu_custom_call.1} parent=1 // pred_region
      %495 = dma.done [#allocation3], 16
    $region17: #{tpu_custom_call.1} parent=1 // pred_fallthru
      _
    %496 = vsyncpa [#allocation3], 1

</llo_original>
